<compile_context>
chip_gen: v5e
topology: v5e:2x2
jax: 0.10.0
libtpu: 0.0.40
codegen_flags: <defaults>
</compile_context>

<pallas_src>
import functools

import jax
import jax.numpy as jnp
from jax.experimental import pallas as pl
from jax.experimental.pallas import tpu as pltpu

IN_DIM = 106
H1_DIM = 70
H2_DIM = 106
H3_DIM = 100
PAD = 128  # lane-aligned feature width used everywhere inside the kernel


def _round_up(n, m):
    return ((n + m - 1) // m) * m


def _pad2d(a, rows, cols):
    out = jnp.zeros((rows, cols), jnp.float32)
    return out.at[: a.shape[0], : a.shape[1]].set(a.astype(jnp.float32))


def discriminator_kernel(x_ref, w1_ref, w2_ref, wh_ref, b_ref, out_ref, *, class_dim):
    dot_dtype = w1_ref.dtype

    # Consolidated bias block: row 0 = b1, row 1 = b2, row 2 = folded head bias.
    b = b_ref[...]
    b1 = b[0:1, :]
    b2 = b[1:2, :]
    bh = b[2:3, :]

    x = x_ref[...]

    # Linear -> ReLU -> Linear -> ReLU   (all K dims 128-padded, exact zero padding)
    h = jnp.dot(x, w1_ref[...], preferred_element_type=jnp.float32) + b1
    h = jnp.maximum(h, 0.0)
    h = jnp.dot(h.astype(dot_dtype), w2_ref[...],
                preferred_element_type=jnp.float32) + b2
    h = jnp.maximum(h, 0.0)

    # Folded Linear(106,100) + fused heads: lane 0 = adversarial logit,
    # lanes 1..class_dim = class logits, rest = zero-weight padding.
    z = jnp.dot(h.astype(dot_dtype), wh_ref[...],
                preferred_element_type=jnp.float32) + bh

    lane = jax.lax.broadcasted_iota(jnp.int32, z.shape, 1)
    is_adv = lane == 0
    is_class = jnp.logical_and(lane >= 1, lane <= class_dim)
    neg_inf = jnp.float32(-jnp.inf)

    # Stable-softmax max over class lanes only.
    m = jnp.max(jnp.where(is_class, z, neg_inf), axis=1, keepdims=True)

    # Single exp pass: lane 0 -> exp(-z) (sigmoid), class -> exp(z-m), pad -> 0.
    arg = jnp.where(is_adv, -z, jnp.where(is_class, z - m, neg_inf))
    e = jnp.exp(arg)

    sum_class = jnp.sum(jnp.where(is_adv, 0.0, e), axis=1, keepdims=True)
    den = jnp.where(is_adv, 1.0 + e, sum_class)
    num = jnp.where(is_adv, 1.0, e)

    # Lane-dense (TB, 128) store: validity in lane 0, softmax in lanes 1..class_dim,
    # exact zeros elsewhere.
    out_ref[...] = num * pl.reciprocal(den, approx=False)


def pack_params(params, class_dim, dot_dtype=jnp.float32):
    """Fold Linear(106,100) into the concatenated heads and zero-pad everything
    to 128 lanes (done once, outside the kernel)."""
    wh = jnp.concatenate([params["wa"], params["wc"]], axis=1)   # (100, 1+class_dim)
    bh = jnp.concatenate([params["ba"], params["bc"]], axis=1)   # (1,   1+class_dim)
    # Exact fold: no nonlinearity between the third Linear and the heads.
    w3h = params["w3"].astype(jnp.float32) @ wh.astype(jnp.float32)          # (106, 1+cd)
    b3h = params["b3"].astype(jnp.float32) @ wh.astype(jnp.float32) + bh     # (1,   1+cd)

    b_pack = jnp.zeros((8, PAD), jnp.float32)
    b_pack = b_pack.at[0, : H1_DIM].set(params["b1"].astype(jnp.float32)[0])
    b_pack = b_pack.at[1, : H2_DIM].set(params["b2"].astype(jnp.float32)[0])
    b_pack = b_pack.at[2, : 1 + class_dim].set(b3h[0])

    return {
        "w1": _pad2d(params["w1"], PAD, PAD).astype(dot_dtype),
        "w2": _pad2d(params["w2"], PAD, PAD).astype(dot_dtype),
        "wh": _pad2d(w3h, PAD, PAD).astype(dot_dtype),
        "b": b_pack,   # biases always f32 (added post-MXU in f32)
    }


def discriminator_forward(x, packed, class_dim, *, tb_max=4096, min_grid_steps=2):
    """x: (B, 106). packed: output of pack_params. Returns (validity, label)."""
    assert 1 + class_dim <= PAD, "fused head requires class_dim <= 127"
    B = x.shape[0]
    dot_dtype = packed["w1"].dtype

    # Batch tile: large to amortize per-step pipeline overhead, capped so the
    # grid has >= min_grid_steps steps (v7x megacore) when the batch allows it.
    step_cap = max(8, _round_up(-(-B // min_grid_steps), 8))
    TB = max(8, min(tb_max, step_cap, _round_up(B, 8)))
    B_pad = _round_up(B, TB)
    x_p = jnp.zeros((B_pad, PAD), dot_dtype).at[:B, :IN_DIM].set(x.astype(dot_dtype))

    grid = (B_pad // TB,)
    row_spec = pl.BlockSpec((TB, PAD), lambda i: (i, 0))    # batch-tiled
    w_spec = pl.BlockSpec((PAD, PAD), lambda i: (0, 0))     # resident across grid
    b_spec = pl.BlockSpec((8, PAD), lambda i: (0, 0))       # resident across grid

    flops = 2 * B * (IN_DIM * H1_DIM + H1_DIM * H2_DIM
                     + H2_DIM * (1 + class_dim))
    transcendentals = B * PAD                                # one exp per lane
    elt = jnp.dtype(dot_dtype).itemsize
    bytes_accessed = B_pad * PAD * (elt + 4) + 3 * PAD * PAD * elt + 8 * PAD * 4

    out = pl.pallas_call(
        functools.partial(discriminator_kernel, class_dim=class_dim),
        out_shape=jax.ShapeDtypeStruct((B_pad, PAD), jnp.float32),
        grid=grid,
        in_specs=[row_spec, w_spec, w_spec, w_spec, b_spec],
        out_specs=row_spec,
        compiler_params=pltpu.CompilerParams(
            dimension_semantics=("parallel",),        # megacore sharding on v7x
            vmem_limit_bytes=32 * 1024 * 1024,        # safe on v5e/v6e/v7x, >> need
        ),
        cost_estimate=pl.CostEstimate(
            flops=int(flops),
            transcendentals=int(transcendentals),
            bytes_accessed=int(bytes_accessed),
        ),
    )(x_p, packed["w1"], packed["w2"], packed["wh"], packed["b"])

    validity = out[:B, 0:1]
    label = out[:B, 1:1 + class_dim]
    return validity, label


def init_params(key, class_dim):
    """PyTorch-style Linear init: U(-1/sqrt(fan_in), +1/sqrt(fan_in)).
    Weights stored as (in, out); biases as (1, out)."""
    dims = [("w1", "b1", 106, 70),
            ("w2", "b2", 70, 106),
            ("w3", "b3", 106, 100),
            ("wa", "ba", 100, 1),
            ("wc", "bc", 100, class_dim)]
    params = {}
    for wname, bname, fan_in, fan_out in dims:
        key, kw, kb = jax.random.split(key, 3)
        bound = 1.0 / jnp.sqrt(float(fan_in))
        params[wname] = jax.random.uniform(
            kw, (fan_in, fan_out), jnp.float32, minval=-bound, maxval=bound)
        params[bname] = jax.random.uniform(
            kb, (1, fan_out), jnp.float32, minval=-bound, maxval=bound)
    return params


def reference_forward(x, p):
    """Unfused reference matching the PyTorch module exactly."""
    h = jnp.maximum(x @ p["w1"] + p["b1"], 0.0)
    h = jnp.maximum(h @ p["w2"] + p["b2"], 0.0)
    h = h @ p["w3"] + p["b3"]
    validity = jax.nn.sigmoid(h @ p["wa"] + p["ba"])
    label = jax.nn.softmax(h @ p["wc"] + p["bc"], axis=1)
    return validity, label


if __name__ == "__main__":
    key = jax.random.PRNGKey(0)
    key, kx, kp = jax.random.split(key, 3)

    B = 8
    CLASS_DIM = 10
    x = jax.random.normal(kx, (B, IN_DIM), jnp.float32)
    params = init_params(kp, CLASS_DIM)

    # f32 dot inputs keep 1e-5 parity; pass dot_dtype=jnp.bfloat16 on v6e/v7x
    # for extra MXU/HBM headroom (loosen tolerances to ~1e-2 accordingly).
    packed = pack_params(params, CLASS_DIM)

    validity, label = discriminator_forward(x, packed, CLASS_DIM)
    jax.block_until_ready((validity, label))

    ref_val, ref_lab = reference_forward(x, params)
    assert validity.shape == (B, 1) and label.shape == (B, CLASS_DIM)
    assert jnp.allclose(validity, ref_val, atol=1e-5, rtol=1e-5)
    assert jnp.allclose(label, ref_lab, atol=1e-5, rtol=1e-5)
    assert jnp.allclose(jnp.sum(label, axis=1), 1.0, atol=1e-5)

    # Exercise the multi-step batch grid + row-padding path at a modest size.
    B2 = 300
    x2 = jax.random.normal(key, (B2, IN_DIM), jnp.float32)
    v2, l2 = discriminator_forward(x2, packed, CLASS_DIM, tb_max=64)
    jax.block_until_ready((v2, l2))
    rv2, rl2 = reference_forward(x2, params)
    assert v2.shape == (B2, 1) and l2.shape == (B2, CLASS_DIM)
    assert jnp.allclose(v2, rv2, atol=1e-5, rtol=1e-5)
    assert jnp.allclose(l2, rl2, atol=1e-5, rtol=1e-5)

    print("KERNEL_OK")
</pallas_src>

<mosaic_0001>
module attributes {stable_mosaic.version = 11 : i64} {
  func.func @discriminator_kernel(%arg0: i32, %arg1: memref<8x128xf32, #tpu.memory_space<vmem>>, %arg2: memref<128x128xf32, #tpu.memory_space<vmem>>, %arg3: memref<128x128xf32, #tpu.memory_space<vmem>>, %arg4: memref<128x128xf32, #tpu.memory_space<vmem>>, %arg5: memref<8x128xf32, #tpu.memory_space<vmem>>, %arg6: memref<8x128xf32, #tpu.memory_space<vmem>>) attributes {dimension_semantics = [#tpu.dimension_semantics<parallel>], iteration_bounds = array<i64: 1>, scalar_prefetch = 0 : i64, scratch_operands = 0 : i64, tpu.core_type = #tpu.core_type<tc>, window_params = [{transform_indices = @transform_0, window_bounds = array<i64: 8, 128>}, {pipeline_mode = #tpu.pipeline_mode<synchronous>, transform_indices = @transform_1, window_bounds = array<i64: 128, 128>}, {pipeline_mode = #tpu.pipeline_mode<synchronous>, transform_indices = @transform_2, window_bounds = array<i64: 128, 128>}, {pipeline_mode = #tpu.pipeline_mode<synchronous>, transform_indices = @transform_3, window_bounds = array<i64: 128, 128>}, {pipeline_mode = #tpu.pipeline_mode<synchronous>, transform_indices = @transform_4, window_bounds = array<i64: 8, 128>}, {transform_indices = @transform_5, window_bounds = array<i64: 8, 128>}]} {
    %c0 = arith.constant 0 : index
    %c0_0 = arith.constant 0 : index
    %0 = vector.load %arg5[%c0, %c0_0] : memref<8x128xf32, #tpu.memory_space<vmem>>, vector<8x128xf32>
    %1 = vector.extract_strided_slice %0 {offsets = [0, 0], sizes = [1, 128], strides = [1, 1]} : vector<8x128xf32> to vector<1x128xf32>
    %2 = vector.extract_strided_slice %0 {offsets = [1, 0], sizes = [1, 128], strides = [1, 1]} : vector<8x128xf32> to vector<1x128xf32>
    %3 = vector.extract_strided_slice %0 {offsets = [2, 0], sizes = [1, 128], strides = [1, 1]} : vector<8x128xf32> to vector<1x128xf32>
    %c0_1 = arith.constant 0 : index
    %c0_2 = arith.constant 0 : index
    %4 = vector.load %arg1[%c0_1, %c0_2] : memref<8x128xf32, #tpu.memory_space<vmem>>, vector<8x128xf32>
    %c0_3 = arith.constant 0 : index
    %c0_4 = arith.constant 0 : index
    %5 = vector.load %arg2[%c0_3, %c0_4] : memref<128x128xf32, #tpu.memory_space<vmem>>, vector<128x128xf32>
    %cst = arith.constant dense<0.000000e+00> : vector<8x128xf32>
    %6 = tpu.matmul %4, %5, %cst {dimension_numbers = #tpu.dot_dimension_numbers<[1], [0], [0], [1], [0, 0, 1, 1], [], []>} : vector<8x128xf32>, vector<128x128xf32>, vector<8x128xf32> -> vector<8x128xf32>
    %7 = vector.broadcast %1 : vector<1x128xf32> to vector<8x128xf32>
    %8 = arith.addf %6, %7 : vector<8x128xf32>
    %cst_5 = arith.constant 0.000000e+00 : f32
    %9 = vector.broadcast %cst_5 : f32 to vector<8x128xf32>
    %10 = arith.maximumf %8, %9 : vector<8x128xf32>
    %c0_6 = arith.constant 0 : index
    %c0_7 = arith.constant 0 : index
    %11 = vector.load %arg3[%c0_6, %c0_7] : memref<128x128xf32, #tpu.memory_space<vmem>>, vector<128x128xf32>
    %cst_8 = arith.constant dense<0.000000e+00> : vector<8x128xf32>
    %12 = tpu.matmul %10, %11, %cst_8 {dimension_numbers = #tpu.dot_dimension_numbers<[1], [0], [0], [1], [0, 0, 1, 1], [], []>} : vector<8x128xf32>, vector<128x128xf32>, vector<8x128xf32> -> vector<8x128xf32>
    %13 = vector.broadcast %2 : vector<1x128xf32> to vector<8x128xf32>
    %14 = arith.addf %12, %13 : vector<8x128xf32>
    %cst_9 = arith.constant 0.000000e+00 : f32
    %15 = vector.broadcast %cst_9 : f32 to vector<8x128xf32>
    %16 = arith.maximumf %14, %15 : vector<8x128xf32>
    %c0_10 = arith.constant 0 : index
    %c0_11 = arith.constant 0 : index
    %17 = vector.load %arg4[%c0_10, %c0_11] : memref<128x128xf32, #tpu.memory_space<vmem>>, vector<128x128xf32>
    %cst_12 = arith.constant dense<0.000000e+00> : vector<8x128xf32>
    %18 = tpu.matmul %16, %17, %cst_12 {dimension_numbers = #tpu.dot_dimension_numbers<[1], [0], [0], [1], [0, 0, 1, 1], [], []>} : vector<8x128xf32>, vector<128x128xf32>, vector<8x128xf32> -> vector<8x128xf32>
    %19 = vector.broadcast %3 : vector<1x128xf32> to vector<8x128xf32>
    %20 = arith.addf %18, %19 : vector<8x128xf32>
    %21 = tpu.iota {dimensions = array<i32: 1>} : vector<8x128xi32>
    %c0_i32 = arith.constant 0 : i32
    %22 = vector.broadcast %c0_i32 : i32 to vector<8x128xi32>
    %23 = arith.cmpi eq, %21, %22 : vector<8x128xi32>
    %c1_i32 = arith.constant 1 : i32
    %24 = vector.broadcast %c1_i32 : i32 to vector<8x128xi32>
    %25 = arith.cmpi sge, %21, %24 : vector<8x128xi32>
    %c10_i32 = arith.constant 10 : i32
    %26 = vector.broadcast %c10_i32 : i32 to vector<8x128xi32>
    %27 = arith.cmpi sle, %21, %26 : vector<8x128xi32>
    %28 = arith.andi %25, %27 : vector<8x128xi1>
    %cst_13 = arith.constant 0xFF800000 : f32
    %29 = vector.broadcast %cst_13 : f32 to vector<8x128xf32>
    %30 = arith.select %28, %20, %29 : vector<8x128xi1>, vector<8x128xf32>
    %cst_14 = arith.constant dense<0xFF800000> : vector<8xf32>
    %31 = vector.multi_reduction <maximumf>, %30, %cst_14 [1] : vector<8x128xf32> to vector<8xf32>
    %32 = vector.shape_cast %31 : vector<8xf32> to vector<8x1xf32>
    %cst_15 = arith.constant 0.000000e+00 : f32
    %33 = vector.broadcast %cst_15 : f32 to vector<8x128xf32>
    %34 = arith.subf %33, %20 : vector<8x128xf32>
    %35 = vector.broadcast %32 : vector<8x1xf32> to vector<8x128xf32>
    %36 = arith.subf %20, %35 : vector<8x128xf32>
    %cst_16 = arith.constant 0xFF800000 : f32
    %37 = vector.broadcast %cst_16 : f32 to vector<8x128xf32>
    %38 = arith.select %28, %36, %37 : vector<8x128xi1>, vector<8x128xf32>
    %39 = arith.select %23, %34, %38 : vector<8x128xi1>, vector<8x128xf32>
    %40 = math.exp %39 : vector<8x128xf32>
    %cst_17 = arith.constant 0.000000e+00 : f32
    %41 = vector.broadcast %cst_17 : f32 to vector<8x128xf32>
    %42 = arith.select %23, %41, %40 : vector<8x128xi1>, vector<8x128xf32>
    %cst_18 = arith.constant dense<0.000000e+00> : vector<8xf32>
    %43 = vector.multi_reduction <add>, %42, %cst_18 [1] : vector<8x128xf32> to vector<8xf32>
    %44 = vector.shape_cast %43 : vector<8xf32> to vector<8x1xf32>
    %cst_19 = arith.constant 1.000000e+00 : f32
    %45 = vector.broadcast %cst_19 : f32 to vector<8x128xf32>
    %46 = arith.addf %45, %40 : vector<8x128xf32>
    %47 = vector.shape_cast %44 : vector<8x1xf32> to vector<8x1xf32>
    %48 = vector.broadcast %47 : vector<8x1xf32> to vector<8x128xf32>
    %49 = arith.select %23, %46, %48 : vector<8x128xi1>, vector<8x128xf32>
    %cst_20 = arith.constant 1.000000e+00 : f32
    %50 = vector.broadcast %cst_20 : f32 to vector<8x128xf32>
    %51 = arith.select %23, %50, %40 : vector<8x128xi1>, vector<8x128xf32>
    %52 = tpu.reciprocal %49 : vector<8x128xf32> -> vector<8x128xf32>
    %53 = arith.mulf %51, %52 : vector<8x128xf32>
    %c0_21 = arith.constant 0 : index
    %c0_22 = arith.constant 0 : index
    %54 = vector.load %arg6[%c0_21, %c0_22] : memref<8x128xf32, #tpu.memory_space<vmem>>, vector<8x128xf32>
    tpu.vector_store %arg6[%c0_21, %c0_22], %53 {strides = array<i32>} : memref<8x128xf32, #tpu.memory_space<vmem>>, vector<8x128xf32>,
    return
  }
  func.func @transform_0(%arg0: i32) -> (i32, i32) {
    %c0_i32 = arith.constant 0 : i32
    %c0_i32_0 = arith.constant 0 : i32
    return %arg0, %c0_i32 : i32, i32
  }
  func.func @transform_1(%arg0: i32) -> (i32, i32) {
    %c0_i32 = arith.constant 0 : i32
    %c0_i32_0 = arith.constant 0 : i32
    %c0_i32_1 = arith.constant 0 : i32
    return %c0_i32, %c0_i32_0 : i32, i32
  }
  func.func @transform_2(%arg0: i32) -> (i32, i32) {
    %c0_i32 = arith.constant 0 : i32
    %c0_i32_0 = arith.constant 0 : i32
    %c0_i32_1 = arith.constant 0 : i32
    return %c0_i32, %c0_i32_0 : i32, i32
  }
  func.func @transform_3(%arg0: i32) -> (i32, i32) {
    %c0_i32 = arith.constant 0 : i32
    %c0_i32_0 = arith.constant 0 : i32
    %c0_i32_1 = arith.constant 0 : i32
    return %c0_i32, %c0_i32_0 : i32, i32
  }
  func.func @transform_4(%arg0: i32) -> (i32, i32) {
    %c0_i32 = arith.constant 0 : i32
    %c0_i32_0 = arith.constant 0 : i32
    %c0_i32_1 = arith.constant 0 : i32
    return %c0_i32, %c0_i32_0 : i32, i32
  }
  func.func @transform_5(%arg0: i32) -> (i32, i32) {
    %c0_i32 = arith.constant 0 : i32
    %c0_i32_0 = arith.constant 0 : i32
    return %arg0, %c0_i32 : i32, i32
  }
}

</mosaic_0001>

<llo_original>
// kernel: tpu_custom_call.1
$region0: #{tpu_custom_call.1}
  #allocation0 [shape = 'u32[]', space=smem, size = 0x4, offset = 0x4, fixed_abs, tag = 'smem constant byte address 0x4 - core index']
  #allocation1 [shape = 'u32[72,128]{1,0:T(1,128)}', space=vmem, size = 0x9000, scoped, tag = 'internal scratch']
  %s0 = inlined_call_operand.hbm [shape: f32[8,128], index: 0, kind: input, shape index: {}]
  %s1 = inlined_call_operand.hbm [shape: f32[128,128], index: 1, kind: input, shape index: {}]
  %s2 = inlined_call_operand.hbm [shape: f32[128,128], index: 2, kind: input, shape index: {}]
  %s3 = inlined_call_operand.hbm [shape: f32[128,128], index: 3, kind: input, shape index: {}]
  %s4 = inlined_call_operand.hbm [shape: f32[8,128], index: 4, kind: input, shape index: {}]
  %s5 = inlined_call_operand.hbm [shape: f32[8,128], index: 5, kind: output, shape index: {}]
  %s6 = sld [smem:[#allocation0]]
  $region50: #{tpu_custom_call.1} parent=0
    _
  %s8 = ssub.s32 1, %s6
  %s9 = scalar_select 0, %s8, %s6
  $region1: #{tpu_custom_call.1} parent=0
    #allocation2 [shape = 'u8[4096]{0}', space=vmem, size = 0x1000, scoped, tag = 'input window, operand 0, single buffered']
    #allocation3 [shape = 's32[1]{0}', space=sflag, size = 0x4, scoped, tag = 'scoped memory for tpu_custom_call.1']
    #allocation4 [shape = 's32[1]{0}', space=sflag, size = 0x4, scoped, tag = 'scoped memory for tpu_custom_call.1']
    #allocation5 [shape = 'u8[65536]{0}', space=vmem, size = 0x10000, scoped, tag = 'input window, operand 1, single buffered']
    #allocation6 [shape = 's32[1]{0}', space=sflag, size = 0x4, scoped, tag = 'scoped memory for tpu_custom_call.1']
    #allocation7 [shape = 'u8[65536]{0}', space=vmem, size = 0x10000, scoped, tag = 'input window, operand 2, single buffered']
    #allocation8 [shape = 'u8[65536]{0}', space=vmem, size = 0x10000, scoped, tag = 'input window, operand 3, single buffered']
    #allocation9 [shape = 's32[1]{0}', space=sflag, size = 0x4, scoped, tag = 'scoped memory for tpu_custom_call.1']
    #allocation10 [shape = 'u8[4096]{0}', space=vmem, size = 0x1000, scoped, tag = 'input window, operand 4, single buffered']
    #allocation11 [shape = 'u8[4096]{0}', space=vmem, size = 0x1000, scoped, tag = 'output window, operand 0, single buffered']
    %10 = vsyncpa [#allocation3], 0
    %11 = vsyncpa [#allocation6], 0
    %12 = vsyncpa [#allocation9], 0
    %13 = vsyncpa [#allocation4], 0
    // Predicated region
    $region2: #{tpu_custom_call.1} parent=1 // pred_check
      _
    $region3: #{tpu_custom_call.1} parent=1 // pred_check_branch
      %15 = sbr.rel (0) target = $region5
    $region4: #{tpu_custom_call.1} parent=1 // pred_region
      %17 = vsyncadd [#allocation3], 0
      %s19 = sshll.u32 %s0, 4
      %s20 = int_to_ptr.hbm [resolvable:$true] %s19
      %s21 = sshll.u32 [#allocation2], 4
      %s22 = int_to_ptr.vmem [resolvable:$true] %s21
      %24 = dma.hbm_to_vmem [thread:$0]  %s20, 128, %s22, [#allocation3]
    $region5: #{tpu_custom_call.1} parent=1 // pred_fallthru
      _
    // Predicated region
    $region6: #{tpu_custom_call.1} parent=1 // pred_check
      _
    $region7: #{tpu_custom_call.1} parent=1 // pred_check_branch
      %26 = sbr.rel (0) target = $region9
    $region8: #{tpu_custom_call.1} parent=1 // pred_region
      %28 = vsyncadd [#allocation6], 0
      %s29 = sshll.u32 %s1, 4
      %s30 = int_to_ptr.hbm [resolvable:$true] %s29
      %s31 = sshll.u32 [#allocation5], 4
      %s32 = int_to_ptr.vmem [resolvable:$true] %s31
      %37 = dma.hbm_to_vmem [thread:$0]  %s30, 2048, %s32, [#allocation6], 128, 128, 8
    $region9: #{tpu_custom_call.1} parent=1 // pred_fallthru
      _
    // Predicated region
    $region10: #{tpu_custom_call.1} parent=1 // pred_check
      _
    $region11: #{tpu_custom_call.1} parent=1 // pred_check_branch
      %39 = sbr.rel (0) target = $region13
    $region12: #{tpu_custom_call.1} parent=1 // pred_region
      %41 = vsyncadd [#allocation6], 0
      %s42 = sshll.u32 %s2, 4
      %s43 = int_to_ptr.hbm [resolvable:$true] %s42
      %s44 = sshll.u32 [#allocation7], 4
      %s45 = int_to_ptr.vmem [resolvable:$true] %s44
      %50 = dma.hbm_to_vmem [thread:$0]  %s43, 2048, %s45, [#allocation6], 128, 128, 8
    $region13: #{tpu_custom_call.1} parent=1 // pred_fallthru
      _
    // Predicated region
    $region14: #{tpu_custom_call.1} parent=1 // pred_check
      _
    $region15: #{tpu_custom_call.1} parent=1 // pred_check_branch
      %52 = sbr.rel (0) target = $region17
    $region16: #{tpu_custom_call.1} parent=1 // pred_region
      %54 = vsyncadd [#allocation9], 0
      %s55 = sshll.u32 %s3, 4
      %s56 = int_to_ptr.hbm [resolvable:$true] %s55
      %s57 = sshll.u32 [#allocation8], 4
      %s58 = int_to_ptr.vmem [resolvable:$true] %s57
      %63 = dma.hbm_to_vmem [thread:$0]  %s56, 2048, %s58, [#allocation9], 128, 128, 8
    $region17: #{tpu_custom_call.1} parent=1 // pred_fallthru
      _
    // Predicated region
    $region18: #{tpu_custom_call.1} parent=1 // pred_check
      _
    $region19: #{tpu_custom_call.1} parent=1 // pred_check_branch
      %65 = sbr.rel (0) target = $region21
    $region20: #{tpu_custom_call.1} parent=1 // pred_region
      %67 = vsyncadd [#allocation9], 0
      %s69 = sshll.u32 %s4, 4
      %s70 = int_to_ptr.hbm [resolvable:$true] %s69
      %s71 = sshll.u32 [#allocation10], 4
      %s72 = int_to_ptr.vmem [resolvable:$true] %s71
      %74 = dma.hbm_to_vmem [thread:$0]  %s70, 128, %s72, [#allocation9]
    $region21: #{tpu_custom_call.1} parent=1 // pred_fallthru
      _
    // Predicated region
    $region22: #{tpu_custom_call.1} parent=1 // pred_check
      _
    $region23: #{tpu_custom_call.1} parent=1 // pred_check_branch
      %76 = sbr.rel (0) target = $region25
    $region24: #{tpu_custom_call.1} parent=1 // pred_region
      %78 = dma.done [#allocation3], 128
    $region25: #{tpu_custom_call.1} parent=1 // pred_fallthru
      _
    // Predicated region
    $region26: #{tpu_custom_call.1} parent=1 // pred_check
      _
    $region27: #{tpu_custom_call.1} parent=1 // pred_check_branch
      %80 = sbr.rel (0) target = $region29
    $region28: #{tpu_custom_call.1} parent=1 // pred_region
      %82 = dma.done [#allocation6], 2048
    $region29: #{tpu_custom_call.1} parent=1 // pred_fallthru
      _
    // Predicated region
    $region30: #{tpu_custom_call.1} parent=1 // pred_check
      _
    $region31: #{tpu_custom_call.1} parent=1 // pred_check_branch
      %84 = sbr.rel (0) target = $region33
    $region32: #{tpu_custom_call.1} parent=1 // pred_region
      %86 = dma.done [#allocation6], 2048
    $region33: #{tpu_custom_call.1} parent=1 // pred_fallthru
      _
    // Predicated region
    $region34: #{tpu_custom_call.1} parent=1 // pred_check
      _
    $region35: #{tpu_custom_call.1} parent=1 // pred_check_branch
      %88 = sbr.rel (0) target = $region37
    $region36: #{tpu_custom_call.1} parent=1 // pred_region
      %90 = dma.done [#allocation9], 2048
    $region37: #{tpu_custom_call.1} parent=1 // pred_fallthru
      _
    // Predicated region
    $region38: #{tpu_custom_call.1} parent=1 // pred_check
      _
    $region39: #{tpu_custom_call.1} parent=1 // pred_check_branch
      %92 = sbr.rel (0) target = $region41
    $region40: #{tpu_custom_call.1} parent=1 // pred_region
      %94 = dma.done [#allocation9], 128
    $region41: #{tpu_custom_call.1} parent=1 // pred_fallthru
      _
    %v95 = vld [vmem:[#allocation10] sm:$0xff]
    %v96 = vld [vmem:[#allocation2] sm:$0xff]
    %v97 = vld [vmem:[#allocation5] sm:$0xff]
    %v98 = vld [vmem:[#allocation5 + $0x8] sm:$0xff]
    %v99 = vld [vmem:[#allocation5 + $0x10] sm:$0xff]
    %v100 = vld [vmem:[#allocation5 + $0x18] sm:$0xff]
    %v101 = vld [vmem:[#allocation5 + $0x20] sm:$0xff]
    %v102 = vld [vmem:[#allocation5 + $0x28] sm:$0xff]
    %v103 = vld [vmem:[#allocation5 + $0x30] sm:$0xff]
    %v104 = vld [vmem:[#allocation5 + $0x38] sm:$0xff]
    %v105 = vld [vmem:[#allocation5 + $0x40] sm:$0xff]
    %v106 = vld [vmem:[#allocation5 + $0x48] sm:$0xff]
    %v107 = vld [vmem:[#allocation5 + $0x50] sm:$0xff]
    %v108 = vld [vmem:[#allocation5 + $0x58] sm:$0xff]
    %v109 = vld [vmem:[#allocation5 + $0x60] sm:$0xff]
    %v110 = vld [vmem:[#allocation5 + $0x68] sm:$0xff]
    %v111 = vld [vmem:[#allocation5 + $0x70] sm:$0xff]
    %v112 = vld [vmem:[#allocation5 + $0x78] sm:$0xff]
    %v113 = vperm.slane %v95, 0
    %114 = vmatpush.msra.mxu0 %v112
    %115 = vmatpush.msra.mxu0 %v111
    %116 = vmatpush.msra.mxu0 %v110
    %117 = vmatpush.msra.mxu0 %v109
    %118 = vmatpush.msra.mxu0 %v108
    %119 = vmatpush.msra.mxu0 %v107
    %120 = vmatpush.msra.mxu0 %v106
    %121 = vmatpush.msra.mxu0 %v105
    %122 = vmatpush.msra.mxu0 %v104
    %123 = vmatpush.msra.mxu0 %v103
    %124 = vmatpush.msra.mxu0 %v102
    %125 = vmatpush.msra.mxu0 %v101
    %126 = vmatpush.msra.mxu0 %v100
    %127 = vmatpush.msra.mxu0 %v99
    %128 = vmatpush.msra.mxu0 %v98
    %129 = vmatpush.msra.mxu0 %v97
    %130 = vmatmul.f32.gmra.mxu0 %v96
    %v131 = vpop.f32.mrf.mxu0
    %v132 = vadd.f32 %v113, %v131
    %133 = vdwg.mxu0
    %v134 = vmax.f32 %v132, 0.0
    %v135 = vld [vmem:[#allocation7] sm:$0xff]
    %v136 = vld [vmem:[#allocation7 + $0x8] sm:$0xff]
    %v137 = vld [vmem:[#allocation7 + $0x10] sm:$0xff]
    %v138 = vld [vmem:[#allocation7 + $0x18] sm:$0xff]
    %v139 = vld [vmem:[#allocation7 + $0x20] sm:$0xff]
    %v140 = vld [vmem:[#allocation7 + $0x28] sm:$0xff]
    %v141 = vld [vmem:[#allocation7 + $0x30] sm:$0xff]
    %v142 = vld [vmem:[#allocation7 + $0x38] sm:$0xff]
    %v143 = vld [vmem:[#allocation7 + $0x40] sm:$0xff]
    %v144 = vld [vmem:[#allocation7 + $0x48] sm:$0xff]
    %v145 = vld [vmem:[#allocation7 + $0x50] sm:$0xff]
    %v146 = vld [vmem:[#allocation7 + $0x58] sm:$0xff]
    %v147 = vld [vmem:[#allocation7 + $0x60] sm:$0xff]
    %v148 = vld [vmem:[#allocation7 + $0x68] sm:$0xff]
    %v149 = vld [vmem:[#allocation7 + $0x70] sm:$0xff]
    %v150 = vld [vmem:[#allocation7 + $0x78] sm:$0xff]
    %v151 = vperm.slane %v95, 1
    %152 = vmatpush.msra.mxu0 %v150
    %153 = vmatpush.msra.mxu0 %v149
    %154 = vmatpush.msra.mxu0 %v148
    %155 = vmatpush.msra.mxu0 %v147
    %156 = vmatpush.msra.mxu0 %v146
    %157 = vmatpush.msra.mxu0 %v145
    %158 = vmatpush.msra.mxu0 %v144
    %159 = vmatpush.msra.mxu0 %v143
    %160 = vmatpush.msra.mxu0 %v142
    %161 = vmatpush.msra.mxu0 %v141
    %162 = vmatpush.msra.mxu0 %v140
    %163 = vmatpush.msra.mxu0 %v139
    %164 = vmatpush.msra.mxu0 %v138
    %165 = vmatpush.msra.mxu0 %v137
    %166 = vmatpush.msra.mxu0 %v136
    %167 = vmatpush.msra.mxu0 %v135
    %168 = vmatmul.f32.gmra.mxu0 %v134
    %v169 = vpop.f32.mrf.mxu0
    %v170 = vadd.f32 %v151, %v169
    %171 = vdwg.mxu0
    %v172 = vmax.f32 %v170, 0.0
    %v173 = vld [vmem:[#allocation8] sm:$0xff]
    %v174 = vld [vmem:[#allocation8 + $0x8] sm:$0xff]
    %v175 = vld [vmem:[#allocation8 + $0x10] sm:$0xff]
    %v176 = vld [vmem:[#allocation8 + $0x18] sm:$0xff]
    %v177 = vld [vmem:[#allocation8 + $0x20] sm:$0xff]
    %v178 = vld [vmem:[#allocation8 + $0x28] sm:$0xff]
    %v179 = vld [vmem:[#allocation8 + $0x30] sm:$0xff]
    %v180 = vld [vmem:[#allocation8 + $0x38] sm:$0xff]
    %v181 = vld [vmem:[#allocation8 + $0x40] sm:$0xff]
    %v182 = vld [vmem:[#allocation8 + $0x48] sm:$0xff]
    %v183 = vld [vmem:[#allocation8 + $0x50] sm:$0xff]
    %v184 = vld [vmem:[#allocation8 + $0x58] sm:$0xff]
    %v185 = vld [vmem:[#allocation8 + $0x60] sm:$0xff]
    %v186 = vld [vmem:[#allocation8 + $0x68] sm:$0xff]
    %v187 = vld [vmem:[#allocation8 + $0x70] sm:$0xff]
    %v188 = vld [vmem:[#allocation8 + $0x78] sm:$0xff]
    %v189 = vperm.slane %v95, 2
    %190 = vmatpush.msra.mxu0 %v188
    %191 = vmatpush.msra.mxu0 %v187
    %192 = vmatpush.msra.mxu0 %v186
    %193 = vmatpush.msra.mxu0 %v185
    %194 = vmatpush.msra.mxu0 %v184
    %195 = vmatpush.msra.mxu0 %v183
    %196 = vmatpush.msra.mxu0 %v182
    %197 = vmatpush.msra.mxu0 %v181
    %198 = vmatpush.msra.mxu0 %v180
    %199 = vmatpush.msra.mxu0 %v179
    %200 = vmatpush.msra.mxu0 %v178
    %201 = vmatpush.msra.mxu0 %v177
    %202 = vmatpush.msra.mxu0 %v176
    %203 = vmatpush.msra.mxu0 %v175
    %204 = vmatpush.msra.mxu0 %v174
    %205 = vmatpush.msra.mxu0 %v173
    %206 = vmatmul.f32.gmra.mxu0 %v172
    %v207 = vpop.f32.mrf.mxu0
    %v208 = vadd.f32 %v189, %v207
    %209 = vdwg.mxu0
    %v210 = vlaneseq
    %v211 = vand.u32 %v210, 127
    %vm212 = vcmp.eq.s32.totalorder %v211, 0
    %vm213 = vcmp.ge.s32.totalorder %v211, 1
    %vm214 = vcmp.le.s32.totalorder %v211, 10
    %vm215 = vmand %vm213, %vm214
    %v216 = vsel %vm215, %v208, -inf
    %217 = vmax.xlane.f32.xlu0 %v216
    %v218 = vpop.xlane.xlu0 %217
    %v219 = vsub.f32 0.0, %v208
    %v220 = vsub.f32 %v208, %v218
    %v221 = vsel %vm215, %v220, -inf
    %v222 = vsel %vm212, %v219, %v221
    %v223 = vmul.f32 %v222, 1.442695
    %v224 = vpow.pop %v223
    %v225 = vsel %vm212, 0.0, %v224
    %226 = vadd.xlane.f32.xlu0 %v225
    %v227 = vpop.xlane.xlu0 %226
    %v228 = vadd.f32 %v224, 1.0
    %v229 = vsel %vm212, %v228, %v227
    %v230 = vsel %vm212, 1.0, %v224
    %v231 = vrcp.pop %v229
    %v232 = vmul.f32 %v229, %v231
    %v233 = vsub.f32 1.0, %v232
    %v234 = vmul.f32 %v231, %v233
    %v235 = vadd.f32 %v231, %v234
    %vm236 = vweird.f32 %v229
    %vm237 = vweird.f32 %v231
    %vm238 = vmor %vm236, %vm237
    %v239 = vsel %vm238, %v231, %v235
    %v240 = vand.u32 2147483647, %v229
    %vm241 = vcmp.eq.f32.partialorder %v240, 8.507059e+37
    %v242 = vand.u32 %v229, 2147483648
    %v243 = vor.u32 1.1754944e-38, %v242
    %v244 = vsel %vm241, %v243, %v239
    %v245 = vmul.f32 %v230, %v244
    %246 = vst [vmem:[#allocation11] sm:$0xff] %v245
    // Predicated region
    $region42: #{tpu_custom_call.1} parent=1 // pred_check
      _
    $region43: #{tpu_custom_call.1} parent=1 // pred_check_branch
      %248 = sbr.rel (0) target = $region45
    $region44: #{tpu_custom_call.1} parent=1 // pred_region
      %250 = vsyncadd [#allocation4], 0
      %s252 = sshll.u32 [#allocation11], 4
      %s253 = int_to_ptr.vmem [resolvable:$true] %s252
      %s254 = sshll.u32 %s5, 4
      %s255 = int_to_ptr.hbm [resolvable:$true] %s254
      %257 = dma.vmem_to_hbm [thread:$0]  %s253, 128, %s255, [#allocation4]
    $region45: #{tpu_custom_call.1} parent=1 // pred_fallthru
      _
    // Predicated region
    $region46: #{tpu_custom_call.1} parent=1 // pred_check
      _
    $region47: #{tpu_custom_call.1} parent=1 // pred_check_branch
      %259 = sbr.rel (0) target = $region49
    $region48: #{tpu_custom_call.1} parent=1 // pred_region
      %261 = dma.done [#allocation4], 128
    $region49: #{tpu_custom_call.1} parent=1 // pred_fallthru
      _
    %262 = vsyncpa [#allocation3], 1
    %263 = vsyncpa [#allocation6], 1
    %264 = vsyncpa [#allocation9], 1
    %265 = vsyncpa [#allocation4], 1

</llo_original>
